<compile_context>
chip_gen: v5e
topology: v5e:2x2
jax: 0.10.0
libtpu: 0.0.40
codegen_flags: <defaults>
</compile_context>

<pallas_src>
import functools

import jax
import jax.numpy as jnp
from jax import lax
from jax.experimental import pallas as pl
from jax.experimental.pallas import tpu as pltpu

LEAKY_SLOPE = 0.01   # nn.LeakyReLU() default
BN_EPS = 1e-5        # nn.BatchNorm2d default


def skip_kernel(lhs_ref, rhs_ref, proj_ref, gamma_ref, beta_ref, out_ref, *,
                inv_count):
    """Fused conv-as-matmul + BatchNorm2d(batch stats) + LeakyReLU.

    lhs_ref:   (R, K)        R = N*H_out rows, K = lane-aligned KH*W_pad*Cin
    rhs_ref:   (K, WC)       block-Toeplitz conv weights, WC = W_out*Cout
    proj_ref:  (WC, WC)      0/1 projector: proj[i, j] = [channel(i)==channel(j)]
    gamma_ref: (1, WC)       BN gamma, pre-tiled per lane
    beta_ref:  (1, WC)       BN beta,  pre-tiled per lane
    out_ref:   (R, WC)       lane-dense output
    """
    # ---- convolution: single lane-dense MXU matmul.
    # Conv bias omitted: it is cancelled exactly by the batch-mean subtraction.
    acc = jnp.dot(lhs_ref[...], rhs_ref[...],
                  preferred_element_type=jnp.float32)           # (R, WC)

    # ---- BatchNorm2d (training-mode, biased batch variance), one stats pass.
    # Sublane reductions give per-(w, c) sums; the projector matmul folds the
    # W_out copies of each channel and broadcasts the result back per lane.
    s1 = jnp.sum(acc, axis=0, keepdims=True)                    # (1, WC)
    s2 = jnp.sum(acc * acc, axis=0, keepdims=True)              # (1, WC)
    mean = jnp.dot(s1, proj_ref[...],
                   preferred_element_type=jnp.float32) * inv_count
    ex2 = jnp.dot(s2, proj_ref[...],
                  preferred_element_type=jnp.float32) * inv_count
    var = ex2 - mean * mean
    scale = gamma_ref[...] * lax.rsqrt(var + BN_EPS)            # (1, WC)
    shift = beta_ref[...] - mean * scale                        # (1, WC)

    # ---- fused affine + LeakyReLU (single pass over acc).
    y = acc * scale + shift
    out_ref[...] = jnp.where(y >= 0, y, LEAKY_SLOPE * y).astype(out_ref.dtype)


@functools.partial(jax.jit, static_argnames=("kernel",))
def skip_forward(x_nchw, w, b, gamma, beta, *, kernel):
    """x_nchw: (N, Cin, H, W) f32, w: (KH, KW, Cin, Cout) (torch weight
    transposed (2,3,1,0)).  Returns (N, Cout, H_out, W_out)."""
    del b  # conv bias cancels exactly under batch-statistics BatchNorm
    N, Cin, H, W = x_nchw.shape
    KH, KW, _, Cout = w.shape
    pad = kernel // 2
    H_out = H + 2 * pad - (KH - 1)
    W_out = W + 2 * pad - (KW - 1)
    W_pad = W + 2 * pad
    WC = W_out * Cout
    R = N * H_out

    # ---------------- wrapper-side layout plumbing (plain JAX) ----------------
    x_nhwc = jnp.transpose(x_nchw, (0, 2, 3, 1)).astype(jnp.float32)
    x_padded = jnp.pad(x_nhwc, ((0, 0), (pad, pad), (pad, pad), (0, 0)))

    # lhs[n*H_out + h, kh*W_pad*Cin + w'*Cin + ci] = x_padded[n, h+kh, w', ci]
    rows = [x_padded[:, kh:kh + H_out, :, :].reshape(N, H_out, W_pad * Cin)
            for kh in range(KH)]
    lhs = jnp.concatenate(rows, axis=-1).reshape(R, KH * W_pad * Cin)

    # block-Toeplitz weights: rhs[(kh, w', ci), (w, co)] = w[kh, w'-w, ci, co]
    cols = [jnp.pad(w.astype(jnp.float32),
                    ((0, 0), (wi, W_pad - KW - wi), (0, 0), (0, 0)))
            for wi in range(W_out)]
    rhs = jnp.stack(cols, axis=3).reshape(KH * W_pad * Cin, WC)

    # lane-align the contraction dim (zeros contribute nothing)
    K = KH * W_pad * Cin
    K_al = ((K + 127) // 128) * 128
    lhs = jnp.pad(lhs, ((0, 0), (0, K_al - K)))
    rhs = jnp.pad(rhs, ((0, K_al - K), (0, 0)))

    # 0/1 projector folding the W_out copies of each channel (lane = w*Cout+co)
    ch = jnp.arange(WC) % Cout
    proj = (ch[:, None] == ch[None, :]).astype(jnp.float32)     # (WC, WC)

    gamma_l = jnp.tile(gamma.reshape(1, Cout).astype(jnp.float32), (1, W_out))
    beta_l = jnp.tile(beta.reshape(1, Cout).astype(jnp.float32), (1, W_out))

    kernel_fn = functools.partial(
        skip_kernel, inv_count=1.0 / float(N * H_out * W_out))

    # Advisory cost hint for XLA's scheduler around the custom call.
    flops = 2 * R * K_al * WC + 2 * 2 * WC * WC + 6 * R * WC
    bytes_accessed = 4 * (R * K_al + K_al * WC + WC * WC + 2 * WC + R * WC)
    cost = pl.CostEstimate(flops=flops, transcendentals=0,
                           bytes_accessed=bytes_accessed)

    # TODO(synk): for large N/H/W/C (sizing against v7x's 64 MiB VMEM) add a
    # grid over row tiles with two-phase BN (partial sum/sumsq scratch +
    # finalize) and mark the row axis "parallel" for the 2 TensorCores;
    # single-shot whole-array VMEM residency is right at these tiny shapes.
    out2d = pl.pallas_call(
        kernel_fn,
        out_shape=jax.ShapeDtypeStruct((R, WC), jnp.float32),
        in_specs=[pl.BlockSpec(memory_space=pltpu.MemorySpace.VMEM)] * 5,
        out_specs=pl.BlockSpec(memory_space=pltpu.MemorySpace.VMEM),
        cost_estimate=cost,
    )(lhs, rhs, proj, gamma_l, beta_l)

    out_nhwc = out2d.reshape(N, H_out, W_out, Cout)
    return jnp.transpose(out_nhwc, (0, 3, 1, 2))                 # back to NCHW


def reference_forward(x_nchw, w, b, gamma, beta, *, kernel):
    """Pure-JAX reference (lax conv + batch-stat BN + leaky relu)."""
    pad = kernel // 2
    x_nhwc = jnp.transpose(x_nchw, (0, 2, 3, 1))
    conv = lax.conv_general_dilated(
        x_nhwc, w, window_strides=(1, 1),
        padding=[(pad, pad), (pad, pad)],
        dimension_numbers=("NHWC", "HWIO", "NHWC"),
    ) + b
    mean = jnp.mean(conv, axis=(0, 1, 2), keepdims=True)
    var = jnp.mean((conv - mean) ** 2, axis=(0, 1, 2), keepdims=True)
    y = (conv - mean) * lax.rsqrt(var + BN_EPS) * gamma + beta
    y = jnp.where(y >= 0, y, LEAKY_SLOPE * y)
    return jnp.transpose(y, (0, 3, 1, 2))


if __name__ == "__main__":
    # Skip(in_channels=4, out_channels=8, kernel=3)
    in_channels, out_channels, kernel = 4, 8, 3
    N, H, W = 2, 16, 16   # W * out_channels == 128 -> exactly lane-dense output

    key = jax.random.PRNGKey(0)
    kx, kw, kb, kg, kbeta = jax.random.split(key, 5)

    x = jax.random.normal(kx, (N, in_channels, H, W), dtype=jnp.float32)
    w = jax.random.normal(kw, (kernel, kernel, in_channels, out_channels),
                          dtype=jnp.float32) * 0.1
    b = jax.random.normal(kb, (out_channels,), dtype=jnp.float32) * 0.1
    gamma = 1.0 + 0.1 * jax.random.normal(kg, (out_channels,), dtype=jnp.float32)
    beta = 0.1 * jax.random.normal(kbeta, (out_channels,), dtype=jnp.float32)

    out = skip_forward(x, w, b, gamma, beta, kernel=kernel)
    out = jax.block_until_ready(out)

    ref = reference_forward(x, w, b, gamma, beta, kernel=kernel)
    assert out.shape == (N, out_channels, H, W), out.shape
    assert jnp.allclose(out, ref, rtol=1e-4, atol=1e-4), \
        float(jnp.max(jnp.abs(out - ref)))

    # Note: the out_channels == 0 case of Skip returns None (no kernel needed).
    print("KERNEL_OK")
</pallas_src>

<mosaic_0001>
module attributes {stable_mosaic.version = 11 : i64} {
  func.func @skip_kernel(%arg0: memref<32x256xf32, #tpu.memory_space<vmem>>, %arg1: memref<256x128xf32, #tpu.memory_space<vmem>>, %arg2: memref<128x128xf32, #tpu.memory_space<vmem>>, %arg3: memref<1x128xf32, #tpu.memory_space<vmem>>, %arg4: memref<1x128xf32, #tpu.memory_space<vmem>>, %arg5: memref<32x128xf32, #tpu.memory_space<vmem>>) attributes {dimension_semantics = [], scalar_prefetch = 0 : i64, scratch_operands = 0 : i64, tpu.core_type = #tpu.core_type<tc>} {
    %c0 = arith.constant 0 : index
    %c0_0 = arith.constant 0 : index
    %0 = vector.load %arg0[%c0, %c0_0] : memref<32x256xf32, #tpu.memory_space<vmem>>, vector<32x256xf32>
    %c0_1 = arith.constant 0 : index
    %c0_2 = arith.constant 0 : index
    %1 = vector.load %arg1[%c0_1, %c0_2] : memref<256x128xf32, #tpu.memory_space<vmem>>, vector<256x128xf32>
    %cst = arith.constant dense<0.000000e+00> : vector<32x128xf32>
    %2 = tpu.matmul %0, %1, %cst {dimension_numbers = #tpu.dot_dimension_numbers<[1], [0], [0], [1], [0, 0, 1, 1], [], []>} : vector<32x256xf32>, vector<256x128xf32>, vector<32x128xf32> -> vector<32x128xf32>
    %cst_3 = arith.constant dense<0.000000e+00> : vector<128xf32>
    %3 = vector.multi_reduction <add>, %2, %cst_3 [0] : vector<32x128xf32> to vector<128xf32>
    %4 = vector.shape_cast %3 : vector<128xf32> to vector<1x128xf32>
    %5 = arith.mulf %2, %2 : vector<32x128xf32>
    %cst_4 = arith.constant dense<0.000000e+00> : vector<128xf32>
    %6 = vector.multi_reduction <add>, %5, %cst_4 [0] : vector<32x128xf32> to vector<128xf32>
    %7 = vector.shape_cast %6 : vector<128xf32> to vector<1x128xf32>
    %c0_5 = arith.constant 0 : index
    %c0_6 = arith.constant 0 : index
    %8 = vector.load %arg2[%c0_5, %c0_6] : memref<128x128xf32, #tpu.memory_space<vmem>>, vector<128x128xf32>
    %cst_7 = arith.constant dense<0.000000e+00> : vector<1x128xf32>
    %9 = tpu.matmul %4, %8, %cst_7 {dimension_numbers = #tpu.dot_dimension_numbers<[1], [0], [0], [1], [0, 0, 1, 1], [], []>} : vector<1x128xf32>, vector<128x128xf32>, vector<1x128xf32> -> vector<1x128xf32>
    %cst_8 = arith.constant 0.001953125 : f32
    %10 = vector.broadcast %cst_8 : f32 to vector<1x128xf32>
    %11 = arith.mulf %9, %10 : vector<1x128xf32>
    %c0_9 = arith.constant 0 : index
    %c0_10 = arith.constant 0 : index
    %12 = vector.load %arg2[%c0_9, %c0_10] : memref<128x128xf32, #tpu.memory_space<vmem>>, vector<128x128xf32>
    %cst_11 = arith.constant dense<0.000000e+00> : vector<1x128xf32>
    %13 = tpu.matmul %7, %12, %cst_11 {dimension_numbers = #tpu.dot_dimension_numbers<[1], [0], [0], [1], [0, 0, 1, 1], [], []>} : vector<1x128xf32>, vector<128x128xf32>, vector<1x128xf32> -> vector<1x128xf32>
    %cst_12 = arith.constant 0.001953125 : f32
    %14 = vector.broadcast %cst_12 : f32 to vector<1x128xf32>
    %15 = arith.mulf %13, %14 : vector<1x128xf32>
    %16 = arith.mulf %11, %11 : vector<1x128xf32>
    %17 = arith.subf %15, %16 : vector<1x128xf32>
    %c0_13 = arith.constant 0 : index
    %c0_14 = arith.constant 0 : index
    %18 = vector.load %arg3[%c0_13, %c0_14] : memref<1x128xf32, #tpu.memory_space<vmem>>, vector<1x128xf32>
    %cst_15 = arith.constant 9.99999974E-6 : f32
    %19 = vector.broadcast %cst_15 : f32 to vector<1x128xf32>
    %20 = arith.addf %17, %19 : vector<1x128xf32>
    %21 = math.rsqrt %20 : vector<1x128xf32>
    %22 = arith.mulf %18, %21 : vector<1x128xf32>
    %c0_16 = arith.constant 0 : index
    %c0_17 = arith.constant 0 : index
    %23 = vector.load %arg4[%c0_16, %c0_17] : memref<1x128xf32, #tpu.memory_space<vmem>>, vector<1x128xf32>
    %24 = arith.mulf %11, %22 : vector<1x128xf32>
    %25 = arith.subf %23, %24 : vector<1x128xf32>
    %26 = vector.broadcast %22 : vector<1x128xf32> to vector<32x128xf32>
    %27 = arith.mulf %2, %26 : vector<32x128xf32>
    %28 = vector.broadcast %25 : vector<1x128xf32> to vector<32x128xf32>
    %29 = arith.addf %27, %28 : vector<32x128xf32>
    %cst_18 = arith.constant 0.000000e+00 : f32
    %30 = vector.broadcast %cst_18 : f32 to vector<32x128xf32>
    %31 = arith.cmpf oge, %29, %30 : vector<32x128xf32>
    %cst_19 = arith.constant 0.00999999977 : f32
    %32 = vector.broadcast %cst_19 : f32 to vector<32x128xf32>
    %33 = arith.mulf %32, %29 : vector<32x128xf32>
    %34 = arith.select %31, %29, %33 : vector<32x128xi1>, vector<32x128xf32>
    %c0_20 = arith.constant 0 : index
    %c0_21 = arith.constant 0 : index
    %35 = vector.load %arg5[%c0_20, %c0_21] : memref<32x128xf32, #tpu.memory_space<vmem>>, vector<32x128xf32>
    tpu.vector_store %arg5[%c0_20, %c0_21], %34 {strides = array<i32>} : memref<32x128xf32, #tpu.memory_space<vmem>>, vector<32x128xf32>,
    return
  }
}

</mosaic_0001>

<llo_original>
// kernel: skip_forward.1
$region0: #{skip_forward.1}
  #allocation0 [shape = 'u32[]', space=smem, size = 0x4, offset = 0x4, fixed_abs, tag = 'smem constant byte address 0x4 - core index']
  #allocation1 [shape = 'u32[72,128]{1,0:T(1,128)}', space=vmem, size = 0x9000, scoped, tag = 'internal scratch']
  %s0 = inlined_call_operand.vmem [shape: f32[32,256], index: 0, kind: input, shape index: {}]
  %s1 = inlined_call_operand.vmem [shape: f32[256,128], index: 1, kind: input, shape index: {}]
  %s2 = inlined_call_operand.vmem [shape: f32[128,128], index: 2, kind: input, shape index: {}]
  %s3 = inlined_call_operand.vmem [shape: f32[1,128], index: 3, kind: input, shape index: {}]
  %s4 = inlined_call_operand.vmem [shape: f32[1,128], index: 4, kind: input, shape index: {}]
  %s5 = inlined_call_operand.vmem [shape: f32[32,128], index: 5, kind: output, shape index: {}]
  %s6 = sld [smem:[#allocation0]]
  $region30: #{skip_forward.1} parent=0
    _
  %s8 = ssub.s32 1, %s6
  %s9 = scalar_select 0, %s8, %s6
  // Predicated region
  $region2: #{skip_forward.1} parent=0 // pred_check
    _
  $region3: #{skip_forward.1} parent=0 // pred_check_branch
    %11 = sbr.rel (0) target = $region5
  $region4: #{skip_forward.1} parent=0 // pred_region
    _
  $region5: #{skip_forward.1} parent=0 // pred_fallthru
    _
  // Predicated region
  $region6: #{skip_forward.1} parent=0 // pred_check
    _
  $region7: #{skip_forward.1} parent=0 // pred_check_branch
    %13 = sbr.rel (0) target = $region9
  $region8: #{skip_forward.1} parent=0 // pred_region
    _
  $region9: #{skip_forward.1} parent=0 // pred_fallthru
    _
  // Predicated region
  $region10: #{skip_forward.1} parent=0 // pred_check
    _
  $region11: #{skip_forward.1} parent=0 // pred_check_branch
    %15 = sbr.rel (0) target = $region13
  $region12: #{skip_forward.1} parent=0 // pred_region
    _
  $region13: #{skip_forward.1} parent=0 // pred_fallthru
    _
  // Predicated region
  $region14: #{skip_forward.1} parent=0 // pred_check
    _
  $region15: #{skip_forward.1} parent=0 // pred_check_branch
    %17 = sbr.rel (0) target = $region17
  $region16: #{skip_forward.1} parent=0 // pred_region
    _
  $region17: #{skip_forward.1} parent=0 // pred_fallthru
    _
  // Predicated region
  $region18: #{skip_forward.1} parent=0 // pred_check
    _
  $region19: #{skip_forward.1} parent=0 // pred_check_branch
    %19 = sbr.rel (0) target = $region21
  $region20: #{skip_forward.1} parent=0 // pred_region
    _
  $region21: #{skip_forward.1} parent=0 // pred_fallthru
    _
  %v20 = vld [vmem:[%s0] sm:$0xff]
  %v21 = vld [vmem:[%s0 + $0x8] sm:$0xff]
  %v22 = vld [vmem:[%s0 + $0x10] sm:$0xff]
  %v23 = vld [vmem:[%s0 + $0x18] sm:$0xff]
  %v24 = vld [vmem:[%s0 + $0x20] sm:$0xff]
  %v25 = vld [vmem:[%s0 + $0x28] sm:$0xff]
  %v26 = vld [vmem:[%s0 + $0x30] sm:$0xff]
  %v27 = vld [vmem:[%s0 + $0x38] sm:$0xff]
  %v28 = vld [vmem:[%s1] sm:$0xff]
  %v29 = vld [vmem:[%s1 + $0x8] sm:$0xff]
  %v30 = vld [vmem:[%s1 + $0x10] sm:$0xff]
  %v31 = vld [vmem:[%s1 + $0x18] sm:$0xff]
  %v32 = vld [vmem:[%s1 + $0x20] sm:$0xff]
  %v33 = vld [vmem:[%s1 + $0x28] sm:$0xff]
  %v34 = vld [vmem:[%s1 + $0x30] sm:$0xff]
  %v35 = vld [vmem:[%s1 + $0x38] sm:$0xff]
  %v36 = vld [vmem:[%s1 + $0x40] sm:$0xff]
  %v37 = vld [vmem:[%s1 + $0x48] sm:$0xff]
  %v38 = vld [vmem:[%s1 + $0x50] sm:$0xff]
  %v39 = vld [vmem:[%s1 + $0x58] sm:$0xff]
  %v40 = vld [vmem:[%s1 + $0x60] sm:$0xff]
  %v41 = vld [vmem:[%s1 + $0x68] sm:$0xff]
  %v42 = vld [vmem:[%s1 + $0x70] sm:$0xff]
  %v43 = vld [vmem:[%s1 + $0x78] sm:$0xff]
  %v44 = vld [vmem:[%s1 + $0x80] sm:$0xff]
  %v45 = vld [vmem:[%s1 + $0x88] sm:$0xff]
  %v46 = vld [vmem:[%s1 + $0x90] sm:$0xff]
  %v47 = vld [vmem:[%s1 + $0x98] sm:$0xff]
  %v48 = vld [vmem:[%s1 + $0xa0] sm:$0xff]
  %v49 = vld [vmem:[%s1 + $0xa8] sm:$0xff]
  %v50 = vld [vmem:[%s1 + $0xb0] sm:$0xff]
  %v51 = vld [vmem:[%s1 + $0xb8] sm:$0xff]
  %v52 = vld [vmem:[%s1 + $0xc0] sm:$0xff]
  %v53 = vld [vmem:[%s1 + $0xc8] sm:$0xff]
  %v54 = vld [vmem:[%s1 + $0xd0] sm:$0xff]
  %v55 = vld [vmem:[%s1 + $0xd8] sm:$0xff]
  %v56 = vld [vmem:[%s1 + $0xe0] sm:$0xff]
  %v57 = vld [vmem:[%s1 + $0xe8] sm:$0xff]
  %v58 = vld [vmem:[%s1 + $0xf0] sm:$0xff]
  %v59 = vld [vmem:[%s1 + $0xf8] sm:$0xff]
  %60 = vmatpush.msra.mxu0 %v43
  %61 = vmatpush.msra.mxu0 %v42
  %62 = vmatpush.msra.mxu0 %v41
  %63 = vmatpush.msra.mxu0 %v40
  %64 = vmatpush.msra.mxu0 %v39
  %65 = vmatpush.msra.mxu0 %v38
  %66 = vmatpush.msra.mxu0 %v37
  %67 = vmatpush.msra.mxu0 %v36
  %68 = vmatpush.msra.mxu0 %v35
  %69 = vmatpush.msra.mxu0 %v34
  %70 = vmatpush.msra.mxu0 %v33
  %71 = vmatpush.msra.mxu0 %v32
  %72 = vmatpush.msra.mxu0 %v31
  %73 = vmatpush.msra.mxu0 %v30
  %74 = vmatpush.msra.mxu0 %v29
  %75 = vmatpush.msra.mxu0 %v28
  %76 = vmatmul.f32.gmra.mxu0 %v20
  %v77 = vpop.f32.mrf.mxu0
  %v78 = vadd.f32 0.0, %v77
  %79 = vmatmul.f32.gmra.mxu0 %v22
  %v80 = vpop.f32.mrf.mxu0
  %v81 = vadd.f32 0.0, %v80
  %82 = vmatmul.f32.gmra.mxu0 %v24
  %v83 = vpop.f32.mrf.mxu0
  %v84 = vadd.f32 0.0, %v83
  %85 = vmatmul.f32.gmra.mxu0 %v26
  %v86 = vpop.f32.mrf.mxu0
  %v87 = vadd.f32 0.0, %v86
  %88 = vdwg.mxu0
  %89 = vmatpush.msra.mxu0 %v59
  %90 = vmatpush.msra.mxu0 %v58
  %91 = vmatpush.msra.mxu0 %v57
  %92 = vmatpush.msra.mxu0 %v56
  %93 = vmatpush.msra.mxu0 %v55
  %94 = vmatpush.msra.mxu0 %v54
  %95 = vmatpush.msra.mxu0 %v53
  %96 = vmatpush.msra.mxu0 %v52
  %97 = vmatpush.msra.mxu0 %v51
  %98 = vmatpush.msra.mxu0 %v50
  %99 = vmatpush.msra.mxu0 %v49
  %100 = vmatpush.msra.mxu0 %v48
  %101 = vmatpush.msra.mxu0 %v47
  %102 = vmatpush.msra.mxu0 %v46
  %103 = vmatpush.msra.mxu0 %v45
  %104 = vmatpush.msra.mxu0 %v44
  %105 = vmatmul.f32.gmra.mxu0 %v21
  %v106 = vpop.f32.mrf.mxu0
  %v107 = vadd.f32 %v78, %v106
  %108 = vmatmul.f32.gmra.mxu0 %v23
  %v109 = vpop.f32.mrf.mxu0
  %v110 = vadd.f32 %v81, %v109
  %111 = vmatmul.f32.gmra.mxu0 %v25
  %v112 = vpop.f32.mrf.mxu0
  %v113 = vadd.f32 %v84, %v112
  %114 = vmatmul.f32.gmra.mxu0 %v27
  %v115 = vpop.f32.mrf.mxu0
  %v116 = vadd.f32 %v87, %v115
  %117 = vdwg.mxu0
  %v118 = vadd.f32 %v107, %v110
  %v119 = vadd.f32 %v118, %v113
  %v120 = vadd.f32 %v119, %v116
  %v121 = vrot.slane %v120, 4
  %v122 = vadd.f32 %v120, %v121
  %v123 = vrot.slane %v122, 2
  %v124 = vadd.f32 %v122, %v123
  %v125 = vrot.slane %v124, 1
  %v126 = vadd.f32 %v124, %v125
  %v127 = vmul.f32 %v107, %v107
  %v128 = vmul.f32 %v110, %v110
  %v129 = vmul.f32 %v113, %v113
  %v130 = vmul.f32 %v116, %v116
  %v131 = vadd.f32 %v127, %v128
  %v132 = vadd.f32 %v131, %v129
  %v133 = vadd.f32 %v132, %v130
  %v134 = vrot.slane %v133, 4
  %v135 = vadd.f32 %v133, %v134
  %v136 = vrot.slane %v135, 2
  %v137 = vadd.f32 %v135, %v136
  %v138 = vrot.slane %v137, 1
  %v139 = vadd.f32 %v137, %v138
  %v140 = vld [vmem:[%s2] sm:$0xff]
  %v141 = vld [vmem:[%s2 + $0x8] sm:$0xff]
  %v142 = vld [vmem:[%s2 + $0x10] sm:$0xff]
  %v143 = vld [vmem:[%s2 + $0x18] sm:$0xff]
  %v144 = vld [vmem:[%s2 + $0x20] sm:$0xff]
  %v145 = vld [vmem:[%s2 + $0x28] sm:$0xff]
  %v146 = vld [vmem:[%s2 + $0x30] sm:$0xff]
  %v147 = vld [vmem:[%s2 + $0x38] sm:$0xff]
  %v148 = vld [vmem:[%s2 + $0x40] sm:$0xff]
  %v149 = vld [vmem:[%s2 + $0x48] sm:$0xff]
  %v150 = vld [vmem:[%s2 + $0x50] sm:$0xff]
  %v151 = vld [vmem:[%s2 + $0x58] sm:$0xff]
  %v152 = vld [vmem:[%s2 + $0x60] sm:$0xff]
  %v153 = vld [vmem:[%s2 + $0x68] sm:$0xff]
  %v154 = vld [vmem:[%s2 + $0x70] sm:$0xff]
  %v155 = vld [vmem:[%s2 + $0x78] sm:$0xff]
  %156 = vmatpush.msra.mxu0 %v155
  %157 = vmatpush.msra.mxu0 %v154
  %158 = vmatpush.msra.mxu0 %v153
  %159 = vmatpush.msra.mxu0 %v152
  %160 = vmatpush.msra.mxu0 %v151
  %161 = vmatpush.msra.mxu0 %v150
  %162 = vmatpush.msra.mxu0 %v149
  %163 = vmatpush.msra.mxu0 %v148
  %164 = vmatpush.msra.mxu0 %v147
  %165 = vmatpush.msra.mxu0 %v146
  %166 = vmatpush.msra.mxu0 %v145
  %167 = vmatpush.msra.mxu0 %v144
  %168 = vmatpush.msra.mxu0 %v143
  %169 = vmatpush.msra.mxu0 %v142
  %170 = vmatpush.msra.mxu0 %v141
  %171 = vmatpush.msra.mxu0 %v140
  %172 = vmatmul.f32.gmra.mxu0 %v126
  %v173 = vpop.f32.mrf.mxu0
  %v174 = vadd.f32 0.0, %v173
  %175 = vdwg.mxu0
  %v176 = vmul.f32 %v174, 0.001953125
  %177 = vmatpush.msra.mxu0 %v155
  %178 = vmatpush.msra.mxu0 %v154
  %179 = vmatpush.msra.mxu0 %v153
  %180 = vmatpush.msra.mxu0 %v152
  %181 = vmatpush.msra.mxu0 %v151
  %182 = vmatpush.msra.mxu0 %v150
  %183 = vmatpush.msra.mxu0 %v149
  %184 = vmatpush.msra.mxu0 %v148
  %185 = vmatpush.msra.mxu0 %v147
  %186 = vmatpush.msra.mxu0 %v146
  %187 = vmatpush.msra.mxu0 %v145
  %188 = vmatpush.msra.mxu0 %v144
  %189 = vmatpush.msra.mxu0 %v143
  %190 = vmatpush.msra.mxu0 %v142
  %191 = vmatpush.msra.mxu0 %v141
  %192 = vmatpush.msra.mxu0 %v140
  %193 = vmatmul.f32.gmra.mxu0 %v139
  %v194 = vpop.f32.mrf.mxu0
  %v195 = vadd.f32 0.0, %v194
  %196 = vdwg.mxu0
  %v197 = vmul.f32 %v195, 0.001953125
  %v198 = vmul.f32 %v176, %v176
  %v199 = vsub.f32 %v197, %v198
  %v200 = vld [vmem:[%s3] sm:$0x1]
  %v201 = vadd.f32 %v199, 1e-05
  %v202 = vrsqrt.pop %v201
  %v203 = vmul.f32 %v202, %v201
  %v204 = vmul.f32 %v203, %v202
  %v205 = vmul.f32 0.5, %v204
  %v206 = vsub.f32 1.5, %v205
  %v207 = vmul.f32 %v202, %v206
  %vm208 = vweird.f32 %v201
  %vm209 = vweird.f32 %v202
  %vm210 = vmor %vm208, %vm209
  %v211 = vsel %vm210, %v202, %v207
  %v212 = vmul.f32 %v200, %v211
  %v213 = vld [vmem:[%s4] sm:$0x1]
  %v214 = vmul.f32 %v176, %v212
  %v215 = vsub.f32 %v213, %v214
  %v217 = vperm.slane %v212, 0
  %v219 = vmul.f32 %v107, %v217
  %v220 = vmul.f32 %v110, %v217
  %v221 = vmul.f32 %v113, %v217
  %v222 = vmul.f32 %v116, %v217
  %v224 = vperm.slane %v215, 0
  %v226 = vadd.f32 %v219, %v224
  %v227 = vadd.f32 %v220, %v224
  %v228 = vadd.f32 %v221, %v224
  %v229 = vadd.f32 %v222, %v224
  %vm230 = vcmp.ge.f32.partialorder %v226, 0.0
  %vm231 = vcmp.ge.f32.partialorder %v227, 0.0
  %vm232 = vcmp.ge.f32.partialorder %v228, 0.0
  %vm233 = vcmp.ge.f32.partialorder %v229, 0.0
  %v234 = vmul.f32 %v226, 0.01
  %v235 = vmul.f32 %v227, 0.01
  %v236 = vmul.f32 %v228, 0.01
  %v237 = vmul.f32 %v229, 0.01
  %v238 = vsel %vm230, %v226, %v234
  %v239 = vsel %vm231, %v227, %v235
  %v240 = vsel %vm232, %v228, %v236
  %v241 = vsel %vm233, %v229, %v237
  %242 = vst [vmem:[%s5] sm:$0xff] %v238
  %243 = vst [vmem:[%s5 + $0x8] sm:$0xff] %v239
  %244 = vst [vmem:[%s5 + $0x10] sm:$0xff] %v240
  %245 = vst [vmem:[%s5 + $0x18] sm:$0xff] %v241
  // Predicated region
  $region22: #{skip_forward.1} parent=0 // pred_check
    _
  $region23: #{skip_forward.1} parent=0 // pred_check_branch
    %247 = sbr.rel (0) target = $region25
  $region24: #{skip_forward.1} parent=0 // pred_region
    _
  $region25: #{skip_forward.1} parent=0 // pred_fallthru
    _
  // Predicated region
  $region26: #{skip_forward.1} parent=0 // pred_check
    _
  $region27: #{skip_forward.1} parent=0 // pred_check_branch
    %249 = sbr.rel (0) target = $region29
  $region28: #{skip_forward.1} parent=0 // pred_region
    _
  $region29: #{skip_forward.1} parent=0 // pred_fallthru
    _

</llo_original>
